<compile_context>
chip_gen: v6e
topology: v6e:2x2x1
jax: 0.10.0
libtpu: 0.0.40
codegen_flags: <defaults>
</compile_context>

<pallas_src>
import jax
import jax.numpy as jnp
from jax.experimental import pallas as pl
from jax.experimental.pallas import tpu as pltpu

D_H1 = 256          # fc1 output
D_H2 = 128          # fc2 output
BIAS_PACK = 512     # 256 (b1) + 128 (b2) + 1 (b3), padded to a lane multiple


def _round_up(n, m):
    return ((n + m - 1) // m) * m


def mlp_kernel(x_ref, w1_ref, w2_ref, w3_ref, bias_ref, o_ref):
    """One batch tile: x (TB, Din) f32 -> sigmoid(fc3(relu(fc2(relu(fc1(x)))))) (TB, 1)."""
    b1 = bias_ref[:, 0:D_H1]                          # (1, 256) f32
    b2 = bias_ref[:, D_H1:D_H1 + D_H2]                # (1, 128) f32
    b3 = bias_ref[:, D_H1 + D_H2:D_H1 + D_H2 + 1]     # (1, 1)   f32

    # In-kernel bf16 cast: x comes in as f32 (single HBM read), MXU sees bf16 operands.
    x = x_ref[...].astype(jnp.bfloat16)

    # fc1 + ReLU (f32 accumulate, f32 elementwise), narrowed to bf16 right away.
    h1 = jnp.dot(x, w1_ref[...], preferred_element_type=jnp.float32) + b1
    h1 = jnp.maximum(h1, 0.0).astype(jnp.bfloat16)    # (TB, 256) bf16

    # fc2 + ReLU.
    h2 = jnp.dot(h1, w2_ref[...], preferred_element_type=jnp.float32) + b2
    h2 = jnp.maximum(h2, 0.0).astype(jnp.bfloat16)    # (TB, 128) bf16

    # fc3: plain (TB,128) @ (128,1) MXU matmul -> no hidden XLU transpose of h2.
    logit = jnp.dot(h2, w3_ref[...], preferred_element_type=jnp.float32) + b3
    o_ref[...] = jax.nn.sigmoid(logit)                # (TB, 1) f32


def from_feature_regressor(x, w1, b1, w2, b2, w3, b3, *, tile_b=2048):
    """x: (B, 2*nb_features) f32; weights (in, out) f32; biases (1, out) f32 -> (B, 1) f32."""
    B, d_in = x.shape

    # Tile selection: clamp for small batches (no near-full tile of padded garbage rows)
    # and split so the grid has >= 2 steps for v7x's two TensorCores.  Always a multiple
    # of 16 (bf16 sublane constraint after the in-kernel cast).
    tile = max(16, min(tile_b, _round_up(B, 16)))
    if B > 16:
        half = max(16, _round_up(pl.cdiv(_round_up(B, 16), 2), 16))
        tile = min(tile, half)
    assert tile % 16 == 0
    grid = (pl.cdiv(B, tile),)   # ragged last block handled by Pallas (masked writes)

    # Small one-time wrapper work: weights to bf16, biases packed into one buffer.
    w1b = w1.astype(jnp.bfloat16)                           # (d_in, 256)
    w2b = w2.astype(jnp.bfloat16)                           # (256, 128)
    w3col = w3.reshape(D_H2, 1).astype(jnp.bfloat16)        # (128, 1)
    bias = jnp.concatenate(
        [b1.reshape(1, D_H1).astype(jnp.float32),
         b2.reshape(1, D_H2).astype(jnp.float32),
         b3.reshape(1, 1).astype(jnp.float32),
         jnp.zeros((1, BIAS_PACK - D_H1 - D_H2 - 1), jnp.float32)],
        axis=1)

    flops = 2 * B * (d_in * D_H1 + D_H1 * D_H2 + D_H2 * 1)
    bytes_accessed = (B * d_in * 4                                 # x (f32, read once)
                      + (d_in * D_H1 + D_H1 * D_H2 + D_H2) * 2     # bf16 weights
                      + BIAS_PACK * 4 + B * 4)                     # biases + output
    cost = pl.CostEstimate(flops=flops, transcendentals=B,
                           bytes_accessed=bytes_accessed)

    out = pl.pallas_call(
        mlp_kernel,
        out_shape=jax.ShapeDtypeStruct((B, 1), jnp.float32),
        grid=grid,
        in_specs=[
            pl.BlockSpec((tile, d_in), lambda i: (i, 0)),      # x tile (f32), pipelined
            pl.BlockSpec((d_in, D_H1), lambda i: (0, 0)),      # w1 resident
            pl.BlockSpec((D_H1, D_H2), lambda i: (0, 0)),      # w2 resident
            pl.BlockSpec((D_H2, 1), lambda i: (0, 0)),         # w3 column resident
            pl.BlockSpec((1, BIAS_PACK), lambda i: (0, 0)),    # packed biases resident
        ],
        out_specs=pl.BlockSpec((tile, 1), lambda i: (i, 0)),
        compiler_params=pltpu.CompilerParams(
            dimension_semantics=("parallel",)),
        cost_estimate=cost,
    )(x, w1b, w2b, w3col, bias)

    return out


def init_params(nb_features, key):
    """Deterministic PyTorch-style (uniform fan-in) init. Weights stored as (in, out)."""
    d_in = 2 * nb_features
    dims = [(d_in, D_H1), (D_H1, D_H2), (D_H2, 1)]
    params = []
    for i, (fin, fout) in enumerate(dims):
        kw, kb = jax.random.split(jax.random.fold_in(key, i))
        bound = 1.0 / (fin ** 0.5)
        w = jax.random.uniform(kw, (fin, fout), jnp.float32, -bound, bound)
        b = jax.random.uniform(kb, (1, fout), jnp.float32, -bound, bound)
        params += [w, b]
    return params


def reference_bf16(x, w1, b1, w2, b2, w3, b3):
    """Reference with the same bf16-operand / f32-accumulate cast points as the kernel."""
    xb = x.astype(jnp.bfloat16)
    w1b, w2b, w3b = (w.astype(jnp.bfloat16) for w in (w1, w2, w3))
    h1 = jnp.maximum(jnp.dot(xb, w1b, preferred_element_type=jnp.float32) + b1, 0.0)
    h2 = jnp.maximum(jnp.dot(h1.astype(jnp.bfloat16), w2b,
                             preferred_element_type=jnp.float32) + b2, 0.0)
    logit = jnp.dot(h2.astype(jnp.bfloat16), w3b.reshape(D_H2, 1),
                    preferred_element_type=jnp.float32) + b3
    return jax.nn.sigmoid(logit)


def reference_f32(x, w1, b1, w2, b2, w3, b3):
    h1 = jax.nn.relu(x @ w1 + b1)
    h2 = jax.nn.relu(h1 @ w2 + b2)
    return jax.nn.sigmoid(h2 @ w3 + b3)


if __name__ == "__main__":
    key = jax.random.PRNGKey(0)
    nb_features = 16          # input dim = 2 * 16 = 32
    batch = 200               # ragged vs. the tile -> exercises 2-step grid + masked tail

    kx, kp = jax.random.split(key)
    x = jax.random.normal(kx, (batch, 2 * nb_features), jnp.float32)
    params = init_params(nb_features, kp)

    out = from_feature_regressor(x, *params)
    out = jax.block_until_ready(out)

    ref_b = reference_bf16(x, *params)
    ref_f = reference_f32(x, *params)
    assert out.shape == (batch, 1)
    assert jnp.all(jnp.isfinite(out))
    assert jnp.allclose(out, ref_b, atol=1e-2, rtol=1e-2)   # same mixed-precision recipe
    assert jnp.allclose(out, ref_f, atol=5e-2, rtol=5e-2)   # original f32 semantics

    print("KERNEL_OK")
</pallas_src>

<mosaic_0001>
module attributes {stable_mosaic.version = 11 : i64} {
  func.func @mlp_kernel(%arg0: i32, %arg1: memref<112x32xf32, #tpu.memory_space<vmem>>, %arg2: memref<32x256xbf16, #tpu.memory_space<vmem>>, %arg3: memref<256x128xbf16, #tpu.memory_space<vmem>>, %arg4: memref<128x1xbf16, #tpu.memory_space<vmem>>, %arg5: memref<1x512xf32, #tpu.memory_space<vmem>>, %arg6: memref<112x1xf32, #tpu.memory_space<vmem>>) attributes {dimension_semantics = [#tpu.dimension_semantics<parallel>], iteration_bounds = array<i64: 2>, scalar_prefetch = 0 : i64, scratch_operands = 0 : i64, tpu.core_type = #tpu.core_type<tc>, window_params = [{transform_indices = @transform_0, window_bounds = array<i64: 112, 32>}, {pipeline_mode = #tpu.pipeline_mode<synchronous>, transform_indices = @transform_1, window_bounds = array<i64: 32, 256>}, {pipeline_mode = #tpu.pipeline_mode<synchronous>, transform_indices = @transform_2, window_bounds = array<i64: 256, 128>}, {pipeline_mode = #tpu.pipeline_mode<synchronous>, transform_indices = @transform_3, window_bounds = array<i64: 128, 1>}, {pipeline_mode = #tpu.pipeline_mode<synchronous>, transform_indices = @transform_4, window_bounds = array<i64: 1, 512>}, {transform_indices = @transform_5, window_bounds = array<i64: 112, 1>}]} {
    %c0 = arith.constant 0 : index
    %c0_0 = arith.constant 0 : index
    %0 = vector.load %arg5[%c0, %c0_0] : memref<1x512xf32, #tpu.memory_space<vmem>>, vector<1x256xf32>
    %c0_1 = arith.constant 0 : index
    %c256 = arith.constant 256 : index
    %1 = vector.load %arg5[%c0_1, %c256] : memref<1x512xf32, #tpu.memory_space<vmem>>, vector<1x128xf32>
    %c0_2 = arith.constant 0 : index
    %c384 = arith.constant 384 : index
    %2 = vector.load %arg5[%c0_2, %c384] : memref<1x512xf32, #tpu.memory_space<vmem>>, vector<1x1xf32>
    %c0_3 = arith.constant 0 : index
    %c0_4 = arith.constant 0 : index
    %3 = vector.load %arg1[%c0_3, %c0_4] : memref<112x32xf32, #tpu.memory_space<vmem>>, vector<112x32xf32>
    %4 = arith.truncf %3 : vector<112x32xf32> to vector<112x32xbf16>
    %c0_5 = arith.constant 0 : index
    %c0_6 = arith.constant 0 : index
    %5 = vector.load %arg2[%c0_5, %c0_6] : memref<32x256xbf16, #tpu.memory_space<vmem>>, vector<32x256xbf16>
    %cst = arith.constant dense<0.000000e+00> : vector<112x256xf32>
    %6 = tpu.matmul %4, %5, %cst {dimension_numbers = #tpu.dot_dimension_numbers<[1], [0], [0], [1], [0, 0, 1, 1], [], []>} : vector<112x32xbf16>, vector<32x256xbf16>, vector<112x256xf32> -> vector<112x256xf32>
    %7 = vector.broadcast %0 : vector<1x256xf32> to vector<112x256xf32>
    %8 = arith.addf %6, %7 : vector<112x256xf32>
    %cst_7 = arith.constant 0.000000e+00 : f32
    %9 = vector.broadcast %cst_7 : f32 to vector<112x256xf32>
    %10 = arith.maximumf %8, %9 : vector<112x256xf32>
    %11 = arith.truncf %10 : vector<112x256xf32> to vector<112x256xbf16>
    %c0_8 = arith.constant 0 : index
    %c0_9 = arith.constant 0 : index
    %12 = vector.load %arg3[%c0_8, %c0_9] : memref<256x128xbf16, #tpu.memory_space<vmem>>, vector<256x128xbf16>
    %cst_10 = arith.constant dense<0.000000e+00> : vector<112x128xf32>
    %13 = tpu.matmul %11, %12, %cst_10 {dimension_numbers = #tpu.dot_dimension_numbers<[1], [0], [0], [1], [0, 0, 1, 1], [], []>} : vector<112x256xbf16>, vector<256x128xbf16>, vector<112x128xf32> -> vector<112x128xf32>
    %14 = vector.broadcast %1 : vector<1x128xf32> to vector<112x128xf32>
    %15 = arith.addf %13, %14 : vector<112x128xf32>
    %cst_11 = arith.constant 0.000000e+00 : f32
    %16 = vector.broadcast %cst_11 : f32 to vector<112x128xf32>
    %17 = arith.maximumf %15, %16 : vector<112x128xf32>
    %18 = arith.truncf %17 : vector<112x128xf32> to vector<112x128xbf16>
    %c0_12 = arith.constant 0 : index
    %c0_13 = arith.constant 0 : index
    %19 = vector.load %arg4[%c0_12, %c0_13] : memref<128x1xbf16, #tpu.memory_space<vmem>>, vector<128x1xbf16>
    %cst_14 = arith.constant dense<0.000000e+00> : vector<112x1xf32>
    %20 = tpu.matmul %18, %19, %cst_14 {dimension_numbers = #tpu.dot_dimension_numbers<[1], [0], [0], [1], [0, 0, 1, 1], [], []>} : vector<112x128xbf16>, vector<128x1xbf16>, vector<112x1xf32> -> vector<112x1xf32>
    %21 = vector.broadcast %2 : vector<1x1xf32> to vector<112x1xf32>
    %22 = arith.addf %20, %21 : vector<112x1xf32>
    %23 = arith.negf %22 : vector<112x1xf32>
    %24 = math.exp %23 : vector<112x1xf32>
    %cst_15 = arith.constant 1.000000e+00 : f32
    %25 = vector.broadcast %cst_15 : f32 to vector<112x1xf32>
    %26 = arith.addf %25, %24 : vector<112x1xf32>
    %27 = arith.divf %25, %26 : vector<112x1xf32>
    %c0_16 = arith.constant 0 : index
    %c0_17 = arith.constant 0 : index
    %28 = vector.load %arg6[%c0_16, %c0_17] : memref<112x1xf32, #tpu.memory_space<vmem>>, vector<112x1xf32>
    tpu.vector_store %arg6[%c0_16, %c0_17], %27 {strides = array<i32>} : memref<112x1xf32, #tpu.memory_space<vmem>>, vector<112x1xf32>,
    return
  }
  func.func @transform_0(%arg0: i32) -> (i32, i32) {
    %c0_i32 = arith.constant 0 : i32
    %c0_i32_0 = arith.constant 0 : i32
    return %arg0, %c0_i32 : i32, i32
  }
  func.func @transform_1(%arg0: i32) -> (i32, i32) {
    %c0_i32 = arith.constant 0 : i32
    %c0_i32_0 = arith.constant 0 : i32
    %c0_i32_1 = arith.constant 0 : i32
    return %c0_i32, %c0_i32_0 : i32, i32
  }
  func.func @transform_2(%arg0: i32) -> (i32, i32) {
    %c0_i32 = arith.constant 0 : i32
    %c0_i32_0 = arith.constant 0 : i32
    %c0_i32_1 = arith.constant 0 : i32
    return %c0_i32, %c0_i32_0 : i32, i32
  }
  func.func @transform_3(%arg0: i32) -> (i32, i32) {
    %c0_i32 = arith.constant 0 : i32
    %c0_i32_0 = arith.constant 0 : i32
    %c0_i32_1 = arith.constant 0 : i32
    return %c0_i32, %c0_i32_0 : i32, i32
  }
  func.func @transform_4(%arg0: i32) -> (i32, i32) {
    %c0_i32 = arith.constant 0 : i32
    %c0_i32_0 = arith.constant 0 : i32
    %c0_i32_1 = arith.constant 0 : i32
    return %c0_i32, %c0_i32_0 : i32, i32
  }
  func.func @transform_5(%arg0: i32) -> (i32, i32) {
    %c0_i32 = arith.constant 0 : i32
    %c0_i32_0 = arith.constant 0 : i32
    return %arg0, %c0_i32 : i32, i32
  }
}

</mosaic_0001>

<llo_original>
// kernel: tpu_custom_call.1
$region0: #{tpu_custom_call.1}
  #allocation0 [shape = 'u32[]', space=smem, size = 0x4, offset = 0x4, fixed_abs, tag = 'smem constant byte address 0x4 - core index']
  #allocation1 [shape = 'u32[144,128]{1,0:T(1,128)}', space=vmem, size = 0x12000, scoped, tag = 'internal scratch']
  %s0 = inlined_call_operand.vmem [shape: f32[200,32], index: 0, kind: input, shape index: {}]
  %s1 = inlined_call_operand.vmem [shape: bf16[32,256], index: 1, kind: input, shape index: {}]
  %s2 = inlined_call_operand.vmem [shape: bf16[256,128], index: 2, kind: input, shape index: {}]
  %s3 = inlined_call_operand.vmem [shape: bf16[128,1], index: 3, kind: input, shape index: {}]
  %s4 = inlined_call_operand.vmem [shape: f32[1,512], index: 4, kind: input, shape index: {}]
  %s5 = inlined_call_operand.vmem [shape: f32[200,1], index: 5, kind: output, shape index: {}]
  %s6 = sld [smem:[#allocation0]]
  $region101: #{tpu_custom_call.1} parent=0
    _
  %s8 = ssub.s32 1, %s6
  %s9 = scalar_select 0, %s8, %s6
  $region1: #{tpu_custom_call.1} parent=0
    #allocation2 [shape = 'u8[114688]{0}', space=vmem, size = 0x1c000, scoped, tag = 'output window, operand 0']
    loop: start=0, step=1, limit=4
    $region2: #{tpu_custom_call.1} parent=1 // loop_pre_header
      _
    $region3: #{tpu_custom_call.1} parent=1 // loop_header
      %s11 = sphi 0, %s15
      %p12 = scmp.ge.s32.totalorder %s11, 4
      %s21 = sphi 0, %s23
      %s24 = sphi 0, %s21
      %s25 = sphi 0, %s24
      %s41 = sphi 0, %s25
      %s45 = sphi 0, %s45
      %s47 = sphi 0, %s45
      %s48 = sphi 0, %s47
      %s62 = sphi 0, %s48
      %s66 = sphi 0, %s66
      %s68 = sphi 0, %s66
      %s69 = sphi 0, %s68
      %s83 = sphi 0, %s69
      %s87 = sphi 0, %s87
      %s89 = sphi 0, %s87
      %s90 = sphi 0, %s89
      %s104 = sphi 0, %s90
      %s108 = sphi 0, %s108
      %s110 = sphi 0, %s108
      %s111 = sphi 0, %s110
      %s125 = sphi 0, %s111
      %s131 = sphi 0, %s133
      %s134 = sphi 0, %s131
      %s135 = sphi 0, %s134
      %s151 = sphi 0, %s135
    $region4: #{tpu_custom_call.1} parent=1 // loop_header_branch
      %14 = sbr.rel (%p12) target = $region8
    $region5: #{tpu_custom_call.1} parent=1 // loop_body
      %s16 = ssub.s32 %s11, 1
      %s17 = ssub.s32 %s11, 2
      %s18 = sadd.s32 %s11, 1
      %s19 = ssub.s32 %s11, %s18
      %p20 = scmp.eq.s32.totalorder %s19, 0
      %s22 = sadd.s32 %s21, 1
      %s23 = scalar_select %p20, %s21, %s22
      %p26 = pneg %p20
      %p27 = scmp.eq.s32.totalorder %s11, 1
      %p28 = por %p26, %p27
      %p29 = scmp.ne.s32.totalorder %s21, %s24
      %p30 = scmp.eq.s32.totalorder %s11, 0
      %p31 = por %p29, %p30
      %p32 = scmp.ne.s32.totalorder %s21, %s24
      %p33 = scmp.eq.s32.totalorder %s16, 1
      %p34 = por %p32, %p33
      %p35 = scmp.ne.s32.totalorder %s24, %s25
      %p36 = scmp.eq.s32.totalorder %s16, 0
      %p37 = por %p35, %p36
      %p38 = scmp.ne.s32.totalorder %s24, %s25
      %p39 = scmp.eq.s32.totalorder %s17, 1
      %p40 = por %p38, %p39
      %p42 = scmp.ne.s32.totalorder %s25, %s41
      %p43 = scmp.eq.s32.totalorder %s17, 0
      %p44 = por %p42, %p43
      %s46 = sadd.s32 %s45, 1
      %p49 = scmp.eq.s32.totalorder %s11, 1
      %p50 = scmp.ne.s32.totalorder %s45, %s47
      %p51 = scmp.eq.s32.totalorder %s11, 0
      %p52 = por %p50, %p51
      %p53 = scmp.ne.s32.totalorder %s45, %s47
      %p54 = scmp.eq.s32.totalorder %s16, 1
      %p55 = por %p53, %p54
      %p56 = scmp.ne.s32.totalorder %s47, %s48
      %p57 = scmp.eq.s32.totalorder %s16, 0
      %p58 = por %p56, %p57
      %p59 = scmp.ne.s32.totalorder %s47, %s48
      %p60 = scmp.eq.s32.totalorder %s17, 1
      %p61 = por %p59, %p60
      %p63 = scmp.ne.s32.totalorder %s48, %s62
      %p64 = scmp.eq.s32.totalorder %s17, 0
      %p65 = por %p63, %p64
      %s67 = sadd.s32 %s66, 1
      %p70 = scmp.eq.s32.totalorder %s11, 1
      %p71 = scmp.ne.s32.totalorder %s66, %s68
      %p72 = scmp.eq.s32.totalorder %s11, 0
      %p73 = por %p71, %p72
      %p74 = scmp.ne.s32.totalorder %s66, %s68
      %p75 = scmp.eq.s32.totalorder %s16, 1
      %p76 = por %p74, %p75
      %p77 = scmp.ne.s32.totalorder %s68, %s69
      %p78 = scmp.eq.s32.totalorder %s16, 0
      %p79 = por %p77, %p78
      %p80 = scmp.ne.s32.totalorder %s68, %s69
      %p81 = scmp.eq.s32.totalorder %s17, 1
      %p82 = por %p80, %p81
      %p84 = scmp.ne.s32.totalorder %s69, %s83
      %p85 = scmp.eq.s32.totalorder %s17, 0
      %p86 = por %p84, %p85
      %s88 = sadd.s32 %s87, 1
      %p91 = scmp.eq.s32.totalorder %s11, 1
      %p92 = scmp.ne.s32.totalorder %s87, %s89
      %p93 = scmp.eq.s32.totalorder %s11, 0
      %p94 = por %p92, %p93
      %p95 = scmp.ne.s32.totalorder %s87, %s89
      %p96 = scmp.eq.s32.totalorder %s16, 1
      %p97 = por %p95, %p96
      %p98 = scmp.ne.s32.totalorder %s89, %s90
      %p99 = scmp.eq.s32.totalorder %s16, 0
      %p100 = por %p98, %p99
      %p101 = scmp.ne.s32.totalorder %s89, %s90
      %p102 = scmp.eq.s32.totalorder %s17, 1
      %p103 = por %p101, %p102
      %p105 = scmp.ne.s32.totalorder %s90, %s104
      %p106 = scmp.eq.s32.totalorder %s17, 0
      %p107 = por %p105, %p106
      %s109 = sadd.s32 %s108, 1
      %p112 = scmp.eq.s32.totalorder %s11, 1
      %p113 = scmp.ne.s32.totalorder %s108, %s110
      %p114 = scmp.eq.s32.totalorder %s11, 0
      %p115 = por %p113, %p114
      %p116 = scmp.ne.s32.totalorder %s108, %s110
      %p117 = scmp.eq.s32.totalorder %s16, 1
      %p118 = por %p116, %p117
      %p119 = scmp.ne.s32.totalorder %s110, %s111
      %p120 = scmp.eq.s32.totalorder %s16, 0
      %p121 = por %p119, %p120
      %p122 = scmp.ne.s32.totalorder %s110, %s111
      %p123 = scmp.eq.s32.totalorder %s17, 1
      %p124 = por %p122, %p123
      %p126 = scmp.ne.s32.totalorder %s111, %s125
      %p127 = scmp.eq.s32.totalorder %s17, 0
      %p128 = por %p126, %p127
      %s129 = ssub.s32 %s11, %s18
      %p130 = scmp.eq.s32.totalorder %s129, 0
      %s132 = sadd.s32 %s131, 1
      %s133 = scalar_select %p130, %s131, %s132
      %p136 = pneg %p130
      %p137 = scmp.eq.s32.totalorder %s11, 1
      %p138 = por %p136, %p137
      %p139 = scmp.ne.s32.totalorder %s131, %s134
      %p140 = scmp.eq.s32.totalorder %s11, 0
      %p141 = por %p139, %p140
      %p142 = scmp.ne.s32.totalorder %s131, %s134
      %p143 = scmp.eq.s32.totalorder %s16, 1
      %p144 = por %p142, %p143
      %p145 = scmp.ne.s32.totalorder %s134, %s135
      %p146 = scmp.eq.s32.totalorder %s16, 0
      %p147 = por %p145, %p146
      %p148 = scmp.ne.s32.totalorder %s134, %s135
      %p149 = scmp.eq.s32.totalorder %s17, 1
      %p150 = por %p148, %p149
      %p152 = scmp.ne.s32.totalorder %s135, %s151
      %p153 = scmp.eq.s32.totalorder %s17, 0
      %p154 = por %p152, %p153
      %p155 = scmp.le.s32.totalorder 1, %s11
      %p156 = scmp.lt.s32.totalorder %s11, 3
      %p157 = pnand %p155, %p156
      %p158 = pneg %p157
      // Predicated region
      $region9: #{tpu_custom_call.1} parent=5 // pred_check
        _
      $region10: #{tpu_custom_call.1} parent=5 // pred_check_branch
        %160 = sbr.rel (%p157) target = $region12
      $region11: #{tpu_custom_call.1} parent=5 // pred_region
        %s161 = ssub.s32 %s11, 1
        // Predicated region
        $region13: #{tpu_custom_call.1} parent=11 // pred_check
          %p162 = pneg %p58
        $region14: #{tpu_custom_call.1} parent=11 // pred_check_branch
          %164 = sbr.rel (%p162) target = $region16
        $region15: #{tpu_custom_call.1} parent=11 // pred_region
          _
        $region16: #{tpu_custom_call.1} parent=11 // pred_fallthru
          _
        // Predicated region
        $region17: #{tpu_custom_call.1} parent=11 // pred_check
          %p165 = pneg %p79
        $region18: #{tpu_custom_call.1} parent=11 // pred_check_branch
          %167 = sbr.rel (%p165) target = $region20
        $region19: #{tpu_custom_call.1} parent=11 // pred_region
          _
        $region20: #{tpu_custom_call.1} parent=11 // pred_fallthru
          _
        // Predicated region
        $region21: #{tpu_custom_call.1} parent=11 // pred_check
          %p168 = pneg %p100
        $region22: #{tpu_custom_call.1} parent=11 // pred_check_branch
          %170 = sbr.rel (%p168) target = $region24
        $region23: #{tpu_custom_call.1} parent=11 // pred_region
          _
        $region24: #{tpu_custom_call.1} parent=11 // pred_fallthru
          _
        // Predicated region
        $region25: #{tpu_custom_call.1} parent=11 // pred_check
          %p171 = pneg %p121
        $region26: #{tpu_custom_call.1} parent=11 // pred_check_branch
          %173 = sbr.rel (%p171) target = $region28
        $region27: #{tpu_custom_call.1} parent=11 // pred_region
          _
        $region28: #{tpu_custom_call.1} parent=11 // pred_fallthru
          _
      $region12: #{tpu_custom_call.1} parent=5 // pred_fallthru
        _
      %p174 = scmp.lt.s32.totalorder %s11, 2
      // Predicated region
      $region29: #{tpu_custom_call.1} parent=5 // pred_check
        %p175 = pneg %p174
      $region30: #{tpu_custom_call.1} parent=5 // pred_check_branch
        %177 = sbr.rel (%p175) target = $region32
      $region31: #{tpu_custom_call.1} parent=5 // pred_region
        // Predicated region
        $region33: #{tpu_custom_call.1} parent=31 // pred_check
          %p178 = pneg %p31
        $region34: #{tpu_custom_call.1} parent=31 // pred_check_branch
          %180 = sbr.rel (%p178) target = $region36
        $region35: #{tpu_custom_call.1} parent=31 // pred_region
          %s181 = smul.u32 14, %s11
          %s182 = ssub.s32 25, %s181
          %p183 = scmp.lt.s32.totalorder %s182, 14
          %s184 = scalar_select %p183, %s182, 14
          %s185 = smul.u32 128, %s184
          %p186 = scmp.lt.s32.totalorder %s181, 24
          %s187 = scalar_select %p186, %s181, 24
          %s188 = smul.addr %s187, 8
          %s189 = scalar_lea.vmem %s0, %s188
          %s190 = smul.u32 14, %s11
          %s191 = ssub.s32 25, %s190
          %p192 = scmp.lt.s32.totalorder %s191, 14
          %s193 = scalar_select %p192, %s191, 14
          %s194 = smul.u32 128, %s193
        $region36: #{tpu_custom_call.1} parent=31 // pred_fallthru
          _
      $region32: #{tpu_custom_call.1} parent=5 // pred_fallthru
        _
      %p195 = scmp.le.s32.totalorder 1, %s11
      %p196 = scmp.lt.s32.totalorder %s11, 3
      %p197 = pnand %p195, %p196
      %p198 = pneg %p197
      // Predicated region
      $region37: #{tpu_custom_call.1} parent=5 // pred_check
        _
      $region38: #{tpu_custom_call.1} parent=5 // pred_check_branch
        %200 = sbr.rel (%p197) target = $region40
      $region39: #{tpu_custom_call.1} parent=5 // pred_region
        %s201 = ssub.s32 %s11, 1
        %s202 = smul.u32 14, %s16
        %s203 = ssub.s32 25, %s202
        %p204 = scmp.lt.s32.totalorder %s203, 14
        %s205 = scalar_select %p204, %s203, 14
        %s206 = smul.u32 128, %s205
        %p207 = scmp.lt.s32.totalorder %s202, 24
        %s208 = scalar_select %p207, %s202, 24
        %s209 = smul.addr %s208, 8
        %s210 = scalar_lea.vmem %s0, %s209
        %p211 = pneg %p37
        %p212 = pneg %p34
        %p213 = pneg %p58
        %p214 = pneg %p55
        %p215 = pneg %p79
        %p216 = pneg %p76
        %p217 = pneg %p100
        %p218 = pneg %p97
        %p219 = pneg %p121
        %p220 = pneg %p118
        %p221 = pneg %p147
        %p222 = pneg %p144
        %s223 = sand.u32 %s134, 1
        %s224 = sand.u32 %s134, 1
        %s225 = smul.addr %s224, 112
        %s226 = scalar_lea.vmem [#allocation2], %s225
        %s227 = smul.u32 14, %s16
        %s228 = ssub.s32 25, %s227
        %p229 = scmp.lt.s32.totalorder %s228, 14
        %s230 = scalar_select %p229, %s228, 14
        %s231 = smul.u32 128, %s230
        %p232 = scmp.lt.s32.totalorder %s227, 24
        %s233 = scalar_select %p232, %s227, 24
        %s234 = smul.addr %s233, 8
        %s235 = scalar_lea.vmem %s0, %s234
        %s236 = smul.u32 14, %s16
        %s237 = ssub.s32 25, %s236
        %p238 = scmp.lt.s32.totalorder %s237, 14
        %s239 = scalar_select %p238, %s237, 14
        %s240 = smul.u32 128, %s239
        %s241 = smul.u32 14, %s16
        %s242 = ssub.s32 25, %s241
        %p243 = scmp.lt.s32.totalorder %s242, 14
        %s244 = scalar_select %p243, %s242, 14
        %s245 = smul.u32 128, %s244
        %v247 = vld [vmem:[%s4] sm:$0x3]
        %v248 = vld [vmem:[%s4 + $0x2] sm:$0x1]
        %v249 = vld [vmem:[%s4 + $0x3] sm:$0x1]
        %v250 = vld [vmem:[%s235] sm:$0xff]
        %v251 = vld [vmem:[%s235 + $0x8] sm:$0xff]
        %v252 = vld [vmem:[%s235 + $0x10] sm:$0xff]
        %v253 = vld [vmem:[%s235 + $0x18] sm:$0xff]
        %v254 = vld [vmem:[%s235 + $0x20] sm:$0xff]
        %v255 = vld [vmem:[%s235 + $0x28] sm:$0xff]
        %v256 = vld [vmem:[%s235 + $0x30] sm:$0xff]
        %v257 = vld [vmem:[%s235 + $0x38] sm:$0xff]
        %v258 = vld [vmem:[%s235 + $0x40] sm:$0xff]
        %v259 = vld [vmem:[%s235 + $0x48] sm:$0xff]
        %v260 = vld [vmem:[%s235 + $0x50] sm:$0xff]
        %v261 = vld [vmem:[%s235 + $0x58] sm:$0xff]
        %v262 = vld [vmem:[%s235 + $0x60] sm:$0xff]
        %v263 = vld [vmem:[%s235 + $0x68] sm:$0xff]
        %v264 = vpack.c.bf16 %v251, %v250
        %v265 = vpack.c.bf16 %v253, %v252
        %v266 = vpack.c.bf16 %v255, %v254
        %v267 = vpack.c.bf16 %v257, %v256
        %v268 = vpack.c.bf16 %v259, %v258
        %v269 = vpack.c.bf16 %v261, %v260
        %v270 = vpack.c.bf16 %v263, %v262
        %v271 = vld [vmem:[%s1] sm:$0xff]
        %v272 = vld [vmem:[%s1 + $0x8] sm:$0xff]
        %v273 = vld [vmem:[%s1 + $0x10] sm:$0xff]
        %v274 = vld [vmem:[%s1 + $0x18] sm:$0xff]
        %v276 = vlaneseq
        %v277 = vshrl.u32 %v276, 7
        %v278 = vsub.s32 0, %v277
        %v279 = vrot.slane %v247, %v278
        %v280 = vlaneseq
        %v281 = vshrl.u32 %v280, 7
        %v282 = vsub.s32 1, %v281
        %v283 = vrot.slane %v247, %v282
        %v290 = vunpack.c.l.b16 %v271
        %v291 = vunpack.c.h.b16 %v271
        %v292 = vunpack.c.l.b16 %v272
        %v293 = vunpack.c.h.b16 %v272
        %v294 = vunpack.c.l.b16 %v273
        %v295 = vunpack.c.h.b16 %v273
        %v296 = vunpack.c.l.b16 %v274
        %v297 = vunpack.c.h.b16 %v274
        %v298 = vpack.c.b16 %v292, %v290
        %v299 = vpack.c.b16 %v293, %v291
        %v300 = vpack.c.b16 %v296, %v294
        %v301 = vpack.c.b16 %v297, %v295
        %vm306 = vcmask 261120
        %v308 = vsel %vm306, %v264, 0
        %v311 = vsel %vm306, %v265, 0
        %v314 = vsel %vm306, %v266, 0
        %v317 = vsel %vm306, %v267, 0
        %v320 = vsel %vm306, %v268, 0
        %v323 = vsel %vm306, %v269, 0
        %v326 = vsel %vm306, %v270, 0
        %328 = vmatprep.subr.bf16.mxu0 0
        %329 = vmatpush1.bf16.msra.mxu0 0
        %330 = vmatprep.subr.bf16.mxu0 0
        %331 = vmatpush1.bf16.msra.mxu0 0
        %332 = vmatprep.subr.bf16.mxu0 0
        %333 = vmatpush1.bf16.msra.mxu0 0
        %334 = vmatprep.subr.bf16.mxu0 0
        %335 = vmatpush1.bf16.msra.mxu0 0
        %336 = vmatprep.subr.bf16.mxu0 0
        %337 = vmatpush1.bf16.msra.mxu0 0
        %338 = vmatprep.subr.bf16.mxu0 0
        %339 = vmatpush1.bf16.msra.mxu0 0
        %340 = vmatprep.subr.bf16.mxu0 %v301
        %341 = vmatpush1.bf16.msra.mxu0 %v300
        %342 = vmatprep.subr.bf16.mxu0 %v299
        %343 = vmatpush1.bf16.msra.mxu0 %v298
        %344 = vmatprep.subr.bf16.mxu0 0
        %345 = vmatpush2.bf16.msra.mxu0 0
        %346 = vmatprep.subr.bf16.mxu0 0
        %347 = vmatpush2.bf16.msra.mxu0 0
        %348 = vmatprep.subr.bf16.mxu0 0
        %349 = vmatpush2.bf16.msra.mxu0 0
        %350 = vmatprep.subr.bf16.mxu0 0
        %351 = vmatpush2.bf16.msra.mxu0 0
        %352 = vmatprep.subr.bf16.mxu0 0
        %353 = vmatpush2.bf16.msra.mxu0 0
        %354 = vmatprep.subr.bf16.mxu0 0
        %355 = vmatpush2.bf16.msra.mxu0 0
        %356 = vmatprep.subr.bf16.mxu0 0
        %357 = vmatpush2.bf16.msra.mxu0 0
        %358 = vmatprep.subr.bf16.mxu0 0
        %359 = vmatpush2.bf16.msra.mxu0 0
        %360 = vmatprep.mubr.bf16.mxu0 0
        %361 = vmatmul.mubr.bf16.gmra.mxu0 %v308
        %v362 = vpop.f32.mrf.mxu0
        %v363 = vadd.f32 %v279, %v362
        %v364 = vpop.f32.mrf.mxu0
        %v365 = vadd.f32 %v283, %v364
        %v366 = vpop.f32.mrf.mxu0
        %v367 = vadd.f32 %v279, %v366
        %v368 = vpop.f32.mrf.mxu0
        %v369 = vadd.f32 %v283, %v368
        %370 = vmatprep.mubr.bf16.mxu0 0
        %371 = vmatmul.mubr.bf16.gmra.mxu0 %v311
        %v372 = vpop.f32.mrf.mxu0
        %v373 = vadd.f32 %v279, %v372
        %v374 = vpop.f32.mrf.mxu0
        %v375 = vadd.f32 %v283, %v374
        %v376 = vpop.f32.mrf.mxu0
        %v377 = vadd.f32 %v279, %v376
        %v378 = vpop.f32.mrf.mxu0
        %v379 = vadd.f32 %v283, %v378
        %380 = vmatprep.mubr.bf16.mxu0 0
        %381 = vmatmul.mubr.bf16.gmra.mxu0 %v314
        %v382 = vpop.f32.mrf.mxu0
        %v383 = vadd.f32 %v279, %v382
        %v384 = vpop.f32.mrf.mxu0
        %v385 = vadd.f32 %v283, %v384
        %v386 = vpop.f32.mrf.mxu0
        %v387 = vadd.f32 %v279, %v386
        %v388 = vpop.f32.mrf.mxu0
        %v389 = vadd.f32 %v283, %v388
        %390 = vmatprep.mubr.bf16.mxu0 0
        %391 = vmatmul.mubr.bf16.gmra.mxu0 %v317
        %v392 = vpop.f32.mrf.mxu0
        %v393 = vadd.f32 %v279, %v392
        %v394 = vpop.f32.mrf.mxu0
        %v395 = vadd.f32 %v283, %v394
        %v396 = vpop.f32.mrf.mxu0
        %v397 = vadd.f32 %v279, %v396
        %v398 = vpop.f32.mrf.mxu0
        %v399 = vadd.f32 %v283, %v398
        %400 = vmatprep.mubr.bf16.mxu0 0
        %401 = vmatmul.mubr.bf16.gmra.mxu0 %v320
        %v402 = vpop.f32.mrf.mxu0
        %v403 = vadd.f32 %v279, %v402
        %v404 = vpop.f32.mrf.mxu0
        %v405 = vadd.f32 %v283, %v404
        %v406 = vpop.f32.mrf.mxu0
        %v407 = vadd.f32 %v279, %v406
        %v408 = vpop.f32.mrf.mxu0
        %v409 = vadd.f32 %v283, %v408
        %410 = vmatprep.mubr.bf16.mxu0 0
        %411 = vmatmul.mubr.bf16.gmra.mxu0 %v323
        %v412 = vpop.f32.mrf.mxu0
        %v413 = vadd.f32 %v279, %v412
        %v414 = vpop.f32.mrf.mxu0
        %v415 = vadd.f32 %v283, %v414
        %v416 = vpop.f32.mrf.mxu0
        %v417 = vadd.f32 %v279, %v416
        %v418 = vpop.f32.mrf.mxu0
        %v419 = vadd.f32 %v283, %v418
        %420 = vmatprep.mubr.bf16.mxu0 0
        %421 = vmatmul.mubr.bf16.gmra.mxu0 %v326
        %v422 = vpop.f32.mrf.mxu0
        %v423 = vadd.f32 %v279, %v422
        %v424 = vpop.f32.mrf.mxu0
        %v425 = vadd.f32 %v283, %v424
        %v426 = vpop.f32.mrf.mxu0
        %v427 = vadd.f32 %v279, %v426
        %v428 = vpop.f32.mrf.mxu0
        %v429 = vadd.f32 %v283, %v428
        %430 = vdwg.mxu0
        %v431 = vmax.f32 %v363, 0.0
        %v432 = vmax.f32 %v365, 0.0
        %v433 = vmax.f32 %v367, 0.0
        %v434 = vmax.f32 %v369, 0.0
        %v435 = vmax.f32 %v373, 0.0
        %v436 = vmax.f32 %v375, 0.0
        %v437 = vmax.f32 %v377, 0.0
        %v438 = vmax.f32 %v379, 0.0
        %v439 = vmax.f32 %v383, 0.0
        %v440 = vmax.f32 %v385, 0.0
        %v441 = vmax.f32 %v387, 0.0
        %v442 = vmax.f32 %v389, 0.0
        %v443 = vmax.f32 %v393, 0.0
        %v444 = vmax.f32 %v395, 0.0
        %v445 = vmax.f32 %v397, 0.0
        %v446 = vmax.f32 %v399, 0.0
        %v447 = vmax.f32 %v403, 0.0
        %v448 = vmax.f32 %v405, 0.0
        %v449 = vmax.f32 %v407, 0.0
        %v450 = vmax.f32 %v409, 0.0
        %v451 = vmax.f32 %v413, 0.0
        %v452 = vmax.f32 %v415, 0.0
        %v453 = vmax.f32 %v417, 0.0
        %v454 = vmax.f32 %v419, 0.0
        %v455 = vmax.f32 %v423, 0.0
        %v456 = vmax.f32 %v425, 0.0
        %v457 = vmax.f32 %v427, 0.0
        %v458 = vmax.f32 %v429, 0.0
        %v459 = vpack.c.bf16 %v433, %v431
        %v460 = vpack.c.bf16 %v434, %v432
        %v461 = vpack.c.bf16 %v437, %v435
        %v462 = vpack.c.bf16 %v438, %v436
        %v463 = vpack.c.bf16 %v441, %v439
        %v464 = vpack.c.bf16 %v442, %v440
        %v465 = vpack.c.bf16 %v445, %v443
        %v466 = vpack.c.bf16 %v446, %v444
        %v467 = vpack.c.bf16 %v449, %v447
        %v468 = vpack.c.bf16 %v450, %v448
        %v469 = vpack.c.bf16 %v453, %v451
        %v470 = vpack.c.bf16 %v454, %v452
        %v471 = vpack.c.bf16 %v457, %v455
        %v472 = vpack.c.bf16 %v458, %v456
        %v473 = vld [vmem:[%s2] sm:$0xf]
        %v474 = vld [vmem:[%s2 + $0x4] sm:$0xf]
        %v475 = vld [vmem:[%s2 + $0x8] sm:$0xf]
        %v476 = vld [vmem:[%s2 + $0xc] sm:$0xf]
        %v477 = vld [vmem:[%s2 + $0x10] sm:$0xf]
        %v478 = vld [vmem:[%s2 + $0x14] sm:$0xf]
        %v479 = vld [vmem:[%s2 + $0x18] sm:$0xf]
        %v480 = vld [vmem:[%s2 + $0x1c] sm:$0xf]
        %v481 = vld [vmem:[%s2 + $0x20] sm:$0xf]
        %v482 = vld [vmem:[%s2 + $0x24] sm:$0xf]
        %v483 = vld [vmem:[%s2 + $0x28] sm:$0xf]
        %v484 = vld [vmem:[%s2 + $0x2c] sm:$0xf]
        %v485 = vld [vmem:[%s2 + $0x30] sm:$0xf]
        %v486 = vld [vmem:[%s2 + $0x34] sm:$0xf]
        %v487 = vld [vmem:[%s2 + $0x38] sm:$0xf]
        %v488 = vld [vmem:[%s2 + $0x3c] sm:$0xf]
        %v489 = vld [vmem:[%s2 + $0x40] sm:$0xf]
        %v490 = vld [vmem:[%s2 + $0x44] sm:$0xf]
        %v491 = vld [vmem:[%s2 + $0x48] sm:$0xf]
        %v492 = vld [vmem:[%s2 + $0x4c] sm:$0xf]
        %v493 = vld [vmem:[%s2 + $0x50] sm:$0xf]
        %v494 = vld [vmem:[%s2 + $0x54] sm:$0xf]
        %v495 = vld [vmem:[%s2 + $0x58] sm:$0xf]
        %v496 = vld [vmem:[%s2 + $0x5c] sm:$0xf]
        %v497 = vld [vmem:[%s2 + $0x60] sm:$0xf]
        %v498 = vld [vmem:[%s2 + $0x64] sm:$0xf]
        %v499 = vld [vmem:[%s2 + $0x68] sm:$0xf]
        %v500 = vld [vmem:[%s2 + $0x6c] sm:$0xf]
        %v501 = vld [vmem:[%s2 + $0x70] sm:$0xf]
        %v502 = vld [vmem:[%s2 + $0x74] sm:$0xf]
        %v503 = vld [vmem:[%s2 + $0x78] sm:$0xf]
        %v504 = vld [vmem:[%s2 + $0x7c] sm:$0xf]
        %v506 = vlaneseq
        %v507 = vshrl.u32 %v506, 7
        %v508 = vsub.s32 0, %v507
        %v509 = vrot.slane %v248, %v508
        %v543 = vunpack.c.l.b16 %v473
        %v544 = vunpack.c.l.b16 %v474
        %v545 = vunpack.c.l.b16 %v475
        %v546 = vunpack.c.l.b16 %v476
        %v547 = vunpack.c.l.b16 %v477
        %v548 = vunpack.c.l.b16 %v478
        %v549 = vunpack.c.l.b16 %v479
        %v550 = vunpack.c.l.b16 %v480
        %v551 = vunpack.c.l.b16 %v481
        %v552 = vunpack.c.l.b16 %v482
        %v553 = vunpack.c.l.b16 %v483
        %v554 = vunpack.c.l.b16 %v484
        %v555 = vunpack.c.l.b16 %v485
        %v556 = vunpack.c.l.b16 %v486
        %v557 = vunpack.c.l.b16 %v487
        %v558 = vunpack.c.l.b16 %v488
        %v559 = vunpack.c.l.b16 %v489
        %v560 = vunpack.c.l.b16 %v490
        %v561 = vunpack.c.l.b16 %v491
        %v562 = vunpack.c.l.b16 %v492
        %v563 = vunpack.c.l.b16 %v493
        %v564 = vunpack.c.l.b16 %v494
        %v565 = vunpack.c.l.b16 %v495
        %v566 = vunpack.c.l.b16 %v496
        %v567 = vunpack.c.l.b16 %v497
        %v568 = vunpack.c.l.b16 %v498
        %v569 = vunpack.c.l.b16 %v499
        %v570 = vunpack.c.l.b16 %v500
        %v571 = vunpack.c.l.b16 %v501
        %v572 = vunpack.c.l.b16 %v502
        %v573 = vunpack.c.l.b16 %v503
        %v574 = vunpack.c.l.b16 %v504
        %v575 = vpack.c.b16 %v544, %v543
        %v576 = vpack.c.b16 %v546, %v545
        %v577 = vpack.c.b16 %v548, %v547
        %v578 = vpack.c.b16 %v550, %v549
        %v579 = vpack.c.b16 %v552, %v551
        %v580 = vpack.c.b16 %v554, %v553
        %v581 = vpack.c.b16 %v556, %v555
        %v582 = vpack.c.b16 %v558, %v557
        %v583 = vpack.c.b16 %v560, %v559
        %v584 = vpack.c.b16 %v562, %v561
        %v585 = vpack.c.b16 %v564, %v563
        %v586 = vpack.c.b16 %v566, %v565
        %v587 = vpack.c.b16 %v568, %v567
        %v588 = vpack.c.b16 %v570, %v569
        %v589 = vpack.c.b16 %v572, %v571
        %v590 = vpack.c.b16 %v574, %v573
        %607 = vmatprep.subr.bf16.mxu0 0
        %608 = vmatpush1.bf16.msra.mxu0 %v582
        %609 = vmatprep.subr.bf16.mxu0 0
        %610 = vmatpush1.bf16.msra.mxu0 %v581
        %611 = vmatprep.subr.bf16.mxu0 0
        %612 = vmatpush1.bf16.msra.mxu0 %v580
        %613 = vmatprep.subr.bf16.mxu0 0
        %614 = vmatpush1.bf16.msra.mxu0 %v579
        %615 = vmatprep.subr.bf16.mxu0 0
        %616 = vmatpush1.bf16.msra.mxu0 %v578
        %617 = vmatprep.subr.bf16.mxu0 0
        %618 = vmatpush1.bf16.msra.mxu0 %v577
        %619 = vmatprep.subr.bf16.mxu0 0
        %620 = vmatpush1.bf16.msra.mxu0 %v576
        %621 = vmatprep.subr.bf16.mxu0 0
        %622 = vmatpush1.bf16.msra.mxu0 %v575
        %623 = vmatprep.subr.bf16.mxu0 0
        %624 = vmatpush2.bf16.msra.mxu0 %v590
        %625 = vmatprep.subr.bf16.mxu0 0
        %626 = vmatpush2.bf16.msra.mxu0 %v589
        %627 = vmatprep.subr.bf16.mxu0 0
        %628 = vmatpush2.bf16.msra.mxu0 %v588
        %629 = vmatprep.subr.bf16.mxu0 0
        %630 = vmatpush2.bf16.msra.mxu0 %v587
        %631 = vmatprep.subr.bf16.mxu0 0
        %632 = vmatpush2.bf16.msra.mxu0 %v586
        %633 = vmatprep.subr.bf16.mxu0 0
        %634 = vmatpush2.bf16.msra.mxu0 %v585
        %635 = vmatprep.subr.bf16.mxu0 0
        %636 = vmatpush2.bf16.msra.mxu0 %v584
        %637 = vmatprep.subr.bf16.mxu0 0
        %638 = vmatpush2.bf16.msra.mxu0 %v583
        %639 = vmatprep.mubr.bf16.mxu0 %v460
        %640 = vmatmul.mubr.bf16.gmra.mxu0 %v459
        %v641 = vpop.f32.mrf.mxu0
        %v642 = vadd.f32 %v509, %v641
        %v643 = vpop.f32.mrf.mxu0
        %v644 = vpop.f32.mrf.mxu0
        %v645 = vadd.f32 %v509, %v644
        %v646 = vpop.f32.mrf.mxu0
        %647 = vmatprep.mubr.bf16.mxu0 %v462
        %648 = vmatmul.mubr.bf16.gmra.mxu0 %v461
        %v649 = vpop.f32.mrf.mxu0
        %v650 = vadd.f32 %v509, %v649
        %v651 = vpop.f32.mrf.mxu0
        %v652 = vpop.f32.mrf.mxu0
        %v653 = vadd.f32 %v509, %v652
        %v654 = vpop.f32.mrf.mxu0
        %655 = vmatprep.mubr.bf16.mxu0 %v464
        %656 = vmatmul.mubr.bf16.gmra.mxu0 %v463
        %v657 = vpop.f32.mrf.mxu0
        %v658 = vadd.f32 %v509, %v657
        %v659 = vpop.f32.mrf.mxu0
        %v660 = vpop.f32.mrf.mxu0
        %v661 = vadd.f32 %v509, %v660
        %v662 = vpop.f32.mrf.mxu0
        %663 = vmatprep.mubr.bf16.mxu0 %v466
        %664 = vmatmul.mubr.bf16.gmra.mxu0 %v465
        %v665 = vpop.f32.mrf.mxu0
        %v666 = vadd.f32 %v509, %v665
        %v667 = vpop.f32.mrf.mxu0
        %v668 = vpop.f32.mrf.mxu0
        %v669 = vadd.f32 %v509, %v668
        %v670 = vpop.f32.mrf.mxu0
        %671 = vmatprep.mubr.bf16.mxu0 %v468
        %672 = vmatmul.mubr.bf16.gmra.mxu0 %v467
        %v673 = vpop.f32.mrf.mxu0
        %v674 = vadd.f32 %v509, %v673
        %v675 = vpop.f32.mrf.mxu0
        %v676 = vpop.f32.mrf.mxu0
        %v677 = vadd.f32 %v509, %v676
        %v678 = vpop.f32.mrf.mxu0
        %679 = vmatprep.mubr.bf16.mxu0 %v470
        %680 = vmatmul.mubr.bf16.gmra.mxu0 %v469
        %v681 = vpop.f32.mrf.mxu0
        %v682 = vadd.f32 %v509, %v681
        %v683 = vpop.f32.mrf.mxu0
        %v684 = vpop.f32.mrf.mxu0
        %v685 = vadd.f32 %v509, %v684
        %v686 = vpop.f32.mrf.mxu0
        %687 = vmatprep.mubr.bf16.mxu0 %v472
        %688 = vmatmul.mubr.bf16.gmra.mxu0 %v471
        %v689 = vpop.f32.mrf.mxu0
        %v690 = vadd.f32 %v509, %v689
        %v691 = vpop.f32.mrf.mxu0
        %v692 = vpop.f32.mrf.mxu0
        %v693 = vadd.f32 %v509, %v692
        %v694 = vpop.f32.mrf.mxu0
        %695 = vdwg.mxu0
        %v696 = vmax.f32 %v642, 0.0
        %v697 = vmax.f32 %v645, 0.0
        %v698 = vmax.f32 %v650, 0.0
        %v699 = vmax.f32 %v653, 0.0
        %v700 = vmax.f32 %v658, 0.0
        %v701 = vmax.f32 %v661, 0.0
        %v702 = vmax.f32 %v666, 0.0
        %v703 = vmax.f32 %v669, 0.0
        %v704 = vmax.f32 %v674, 0.0
        %v705 = vmax.f32 %v677, 0.0
        %v706 = vmax.f32 %v682, 0.0
        %v707 = vmax.f32 %v685, 0.0
        %v708 = vmax.f32 %v690, 0.0
        %v709 = vmax.f32 %v693, 0.0
        %v710 = vpack.c.bf16 %v697, %v696
        %v711 = vpack.c.bf16 %v699, %v698
        %v712 = vpack.c.bf16 %v701, %v700
        %v713 = vpack.c.bf16 %v703, %v702
        %v714 = vpack.c.bf16 %v705, %v704
        %v715 = vpack.c.bf16 %v707, %v706
        %v716 = vpack.c.bf16 %v709, %v708
        %v717 = vld [vmem:[%s3] sm:$0xf]
        %v718 = vld [vmem:[%s3 + $0x4] sm:$0xf]
        %v719 = vld [vmem:[%s3 + $0x8] sm:$0xf]
        %v720 = vld [vmem:[%s3 + $0xc] sm:$0xf]
        %v721 = vld [vmem:[%s3 + $0x10] sm:$0xf]
        %v722 = vld [vmem:[%s3 + $0x14] sm:$0xf]
        %v723 = vld [vmem:[%s3 + $0x18] sm:$0xf]
        %v724 = vld [vmem:[%s3 + $0x1c] sm:$0xf]
        %v725 = vld [vmem:[%s3 + $0x20] sm:$0xf]
        %v726 = vld [vmem:[%s3 + $0x24] sm:$0xf]
        %v727 = vld [vmem:[%s3 + $0x28] sm:$0xf]
        %v728 = vld [vmem:[%s3 + $0x2c] sm:$0xf]
        %v729 = vld [vmem:[%s3 + $0x30] sm:$0xf]
        %v730 = vld [vmem:[%s3 + $0x34] sm:$0xf]
        %v731 = vld [vmem:[%s3 + $0x38] sm:$0xf]
        %v732 = vld [vmem:[%s3 + $0x3c] sm:$0xf]
        %v734 = vlaneseq
        %v735 = vshrl.u32 %v734, 7
        %v736 = vsub.s32 0, %v735
        %v737 = vrot.slane %v249, %v736
        %v755 = vunpack.c.l.b16 %v717
        %v756 = vunpack.c.l.b16 %v718
        %v757 = vunpack.c.l.b16 %v719
        %v758 = vunpack.c.l.b16 %v720
        %v759 = vunpack.c.l.b16 %v721
        %v760 = vunpack.c.l.b16 %v722
        %v761 = vunpack.c.l.b16 %v723
        %v762 = vunpack.c.l.b16 %v724
        %v763 = vunpack.c.l.b16 %v725
        %v764 = vunpack.c.l.b16 %v726
        %v765 = vunpack.c.l.b16 %v727
        %v766 = vunpack.c.l.b16 %v728
        %v767 = vunpack.c.l.b16 %v729
        %v768 = vunpack.c.l.b16 %v730
        %v769 = vunpack.c.l.b16 %v731
        %v770 = vunpack.c.l.b16 %v732
        %v771 = vpack.c.b16 %v756, %v755
        %v772 = vpack.c.b16 %v758, %v757
        %v773 = vpack.c.b16 %v760, %v759
        %v774 = vpack.c.b16 %v762, %v761
        %v775 = vpack.c.b16 %v764, %v763
        %v776 = vpack.c.b16 %v766, %v765
        %v777 = vpack.c.b16 %v768, %v767
        %v778 = vpack.c.b16 %v770, %v769
        %787 = vmatprep.subr.bf16.mxu0 0
        %788 = vmatpush1.bf16.msra.mxu0 %v778
        %789 = vmatprep.subr.bf16.mxu0 0
        %790 = vmatpush1.bf16.msra.mxu0 %v777
        %791 = vmatprep.subr.bf16.mxu0 0
        %792 = vmatpush1.bf16.msra.mxu0 %v776
        %793 = vmatprep.subr.bf16.mxu0 0
        %794 = vmatpush1.bf16.msra.mxu0 %v775
        %795 = vmatprep.subr.bf16.mxu0 0
        %796 = vmatpush1.bf16.msra.mxu0 %v774
        %797 = vmatprep.subr.bf16.mxu0 0
        %798 = vmatpush1.bf16.msra.mxu0 %v773
        %799 = vmatprep.subr.bf16.mxu0 0
        %800 = vmatpush1.bf16.msra.mxu0 %v772
        %801 = vmatprep.subr.bf16.mxu0 0
        %802 = vmatpush1.bf16.msra.mxu0 %v771
        %803 = vmatprep.subr.bf16.mxu0 0
        %804 = vmatpush2.bf16.msra.mxu0 0
        %805 = vmatprep.subr.bf16.mxu0 0
        %806 = vmatpush2.bf16.msra.mxu0 0
        %807 = vmatprep.subr.bf16.mxu0 0
        %808 = vmatpush2.bf16.msra.mxu0 0
        %809 = vmatprep.subr.bf16.mxu0 0
        %810 = vmatpush2.bf16.msra.mxu0 0
        %811 = vmatprep.subr.bf16.mxu0 0
        %812 = vmatpush2.bf16.msra.mxu0 0
        %813 = vmatprep.subr.bf16.mxu0 0
        %814 = vmatpush2.bf16.msra.mxu0 0
        %815 = vmatprep.subr.bf16.mxu0 0
        %816 = vmatpush2.bf16.msra.mxu0 0
        %817 = vmatprep.subr.bf16.mxu0 0
        %818 = vmatpush2.bf16.msra.mxu0 0
        %819 = vmatprep.mubr.bf16.mxu0 0
        %820 = vmatmul.mubr.bf16.gmra.mxu0 %v710
        %v821 = vpop.f32.mrf.mxu0
        %v822 = vadd.f32 %v737, %v821
        %v823 = vpop.f32.mrf.mxu0
        %v824 = vpop.f32.mrf.mxu0
        %v825 = vadd.f32 %v737, %v824
        %v826 = vpop.f32.mrf.mxu0
        %827 = vmatprep.mubr.bf16.mxu0 0
        %828 = vmatmul.mubr.bf16.gmra.mxu0 %v711
        %v829 = vpop.f32.mrf.mxu0
        %v830 = vadd.f32 %v737, %v829
        %v831 = vpop.f32.mrf.mxu0
        %v832 = vpop.f32.mrf.mxu0
        %v833 = vadd.f32 %v737, %v832
        %v834 = vpop.f32.mrf.mxu0
        %835 = vmatprep.mubr.bf16.mxu0 0
        %836 = vmatmul.mubr.bf16.gmra.mxu0 %v712
        %v837 = vpop.f32.mrf.mxu0
        %v838 = vadd.f32 %v737, %v837
        %v839 = vpop.f32.mrf.mxu0
        %v840 = vpop.f32.mrf.mxu0
        %v841 = vadd.f32 %v737, %v840
        %v842 = vpop.f32.mrf.mxu0
        %843 = vmatprep.mubr.bf16.mxu0 0
        %844 = vmatmul.mubr.bf16.gmra.mxu0 %v713
        %v845 = vpop.f32.mrf.mxu0
        %v846 = vadd.f32 %v737, %v845
        %v847 = vpop.f32.mrf.mxu0
        %v848 = vpop.f32.mrf.mxu0
        %v849 = vadd.f32 %v737, %v848
        %v850 = vpop.f32.mrf.mxu0
        %851 = vmatprep.mubr.bf16.mxu0 0
        %852 = vmatmul.mubr.bf16.gmra.mxu0 %v714
        %v853 = vpop.f32.mrf.mxu0
        %v854 = vadd.f32 %v737, %v853
        %v855 = vpop.f32.mrf.mxu0
        %v856 = vpop.f32.mrf.mxu0
        %v857 = vadd.f32 %v737, %v856
        %v858 = vpop.f32.mrf.mxu0
        %859 = vmatprep.mubr.bf16.mxu0 0
        %860 = vmatmul.mubr.bf16.gmra.mxu0 %v715
        %v861 = vpop.f32.mrf.mxu0
        %v862 = vadd.f32 %v737, %v861
        %v863 = vpop.f32.mrf.mxu0
        %v864 = vpop.f32.mrf.mxu0
        %v865 = vadd.f32 %v737, %v864
        %v866 = vpop.f32.mrf.mxu0
        %867 = vmatprep.mubr.bf16.mxu0 0
        %868 = vmatmul.mubr.bf16.gmra.mxu0 %v716
        %v869 = vpop.f32.mrf.mxu0
        %v870 = vadd.f32 %v737, %v869
        %v871 = vpop.f32.mrf.mxu0
        %v872 = vpop.f32.mrf.mxu0
        %v873 = vadd.f32 %v737, %v872
        %v874 = vpop.f32.mrf.mxu0
        %875 = vdwg.mxu0
        %v876 = vxor.u32 %v822, 2147483648
        %v877 = vxor.u32 %v825, 2147483648
        %v878 = vxor.u32 %v830, 2147483648
        %v879 = vxor.u32 %v833, 2147483648
        %v880 = vxor.u32 %v838, 2147483648
        %v881 = vxor.u32 %v841, 2147483648
        %v882 = vxor.u32 %v846, 2147483648
        %v883 = vxor.u32 %v849, 2147483648
        %v884 = vxor.u32 %v854, 2147483648
        %v885 = vxor.u32 %v857, 2147483648
        %v886 = vxor.u32 %v862, 2147483648
        %v887 = vxor.u32 %v865, 2147483648
        %v888 = vxor.u32 %v870, 2147483648
        %v889 = vxor.u32 %v873, 2147483648
        %v890 = vmul.f32 %v876, 1.442695
        %v891 = vpow.pop %v890
        %v892 = vmul.f32 %v877, 1.442695
        %v893 = vpow.pop %v892
        %v894 = vmul.f32 %v878, 1.442695
        %v895 = vpow.pop %v894
        %v896 = vmul.f32 %v879, 1.442695
        %v897 = vpow.pop %v896
        %v898 = vmul.f32 %v880, 1.442695
        %v899 = vpow.pop %v898
        %v900 = vmul.f32 %v881, 1.442695
        %v901 = vpow.pop %v900
        %v902 = vmul.f32 %v882, 1.442695
        %v903 = vpow.pop %v902
        %v904 = vmul.f32 %v883, 1.442695
        %v905 = vpow.pop %v904
        %v906 = vmul.f32 %v884, 1.442695
        %v907 = vpow.pop %v906
        %v908 = vmul.f32 %v885, 1.442695
        %v909 = vpow.pop %v908
        %v910 = vmul.f32 %v886, 1.442695
        %v911 = vpow.pop %v910
        %v912 = vmul.f32 %v887, 1.442695
        %v913 = vpow.pop %v912
        %v914 = vmul.f32 %v888, 1.442695
        %v915 = vpow.pop %v914
        %v916 = vmul.f32 %v889, 1.442695
        %v917 = vpow.pop %v916
        %v918 = vadd.f32 %v891, 1.0
        %v919 = vadd.f32 %v893, 1.0
        %v920 = vadd.f32 %v895, 1.0
        %v921 = vadd.f32 %v897, 1.0
        %v922 = vadd.f32 %v899, 1.0
        %v923 = vadd.f32 %v901, 1.0
        %v924 = vadd.f32 %v903, 1.0
        %v925 = vadd.f32 %v905, 1.0
        %v926 = vadd.f32 %v907, 1.0
        %v927 = vadd.f32 %v909, 1.0
        %v928 = vadd.f32 %v911, 1.0
        %v929 = vadd.f32 %v913, 1.0
        %v930 = vadd.f32 %v915, 1.0
        %v931 = vadd.f32 %v917, 1.0
        %v932 = vrcp.pop %v918
        %v933 = vmul.f32 1.0, %v932
        %v934 = vrcp.pop %v919
        %v935 = vmul.f32 1.0, %v934
        %v936 = vrcp.pop %v920
        %v937 = vmul.f32 1.0, %v936
        %v938 = vrcp.pop %v921
        %v939 = vmul.f32 1.0, %v938
        %v940 = vrcp.pop %v922
        %v941 = vmul.f32 1.0, %v940
        %v942 = vrcp.pop %v923
        %v943 = vmul.f32 1.0, %v942
        %v944 = vrcp.pop %v924
        %v945 = vmul.f32 1.0, %v944
        %v946 = vrcp.pop %v925
        %v947 = vmul.f32 1.0, %v946
        %v948 = vrcp.pop %v926
        %v949 = vmul.f32 1.0, %v948
        %v950 = vrcp.pop %v927
        %v951 = vmul.f32 1.0, %v950
        %v952 = vrcp.pop %v928
        %v953 = vmul.f32 1.0, %v952
        %v954 = vrcp.pop %v929
        %v955 = vmul.f32 1.0, %v954
        %v956 = vrcp.pop %v930
        %v957 = vmul.f32 1.0, %v956
        %v958 = vrcp.pop %v931
        %v959 = vmul.f32 1.0, %v958
        %vm960 = vcmask 7168
        %961 = vst.msk [vmem:[%s226] sm:$0xff] %vm960, %v933
        %962 = vst.msk [vmem:[%s226 + $0x8] sm:$0xff] %vm960, %v935
        %963 = vst.msk [vmem:[%s226 + $0x10] sm:$0xff] %vm960, %v937
        %964 = vst.msk [vmem:[%s226 + $0x18] sm:$0xff] %vm960, %v939
        %965 = vst.msk [vmem:[%s226 + $0x20] sm:$0xff] %vm960, %v941
        %966 = vst.msk [vmem:[%s226 + $0x28] sm:$0xff] %vm960, %v943
        %967 = vst.msk [vmem:[%s226 + $0x30] sm:$0xff] %vm960, %v945
        %968 = vst.msk [vmem:[%s226 + $0x38] sm:$0xff] %vm960, %v947
        %969 = vst.msk [vmem:[%s226 + $0x40] sm:$0xff] %vm960, %v949
        %970 = vst.msk [vmem:[%s226 + $0x48] sm:$0xff] %vm960, %v951
        %971 = vst.msk [vmem:[%s226 + $0x50] sm:$0xff] %vm960, %v953
        %972 = vst.msk [vmem:[%s226 + $0x58] sm:$0xff] %vm960, %v955
        %973 = vst.msk [vmem:[%s226 + $0x60] sm:$0xff] %vm960, %v957
        %974 = vst.msk [vmem:[%s226 + $0x68] sm:$0xff] %vm960, %v959
        %s975 = sand.u32 %s134, 1
        %s976 = sand.u32 %s134, 1
        %s977 = smul.addr %s976, 112
        %s978 = scalar_lea.vmem [#allocation2], %s977
        // Predicated region
        $region41: #{tpu_custom_call.1} parent=39 // pred_check
          %p979 = pneg %p144
        $region42: #{tpu_custom_call.1} parent=39 // pred_check_branch
          %981 = sbr.rel (%p979) target = $region44
        $region43: #{tpu_custom_call.1} parent=39 // pred_region
          %s982 = smul.u32 14, %s16
          %s983 = ssub.s32 25, %s982
          %p984 = scmp.lt.s32.totalorder %s983, 14
          %s985 = scalar_select %p984, %s983, 14
          %s986 = smul.u32 128, %s985
          %p987 = scmp.ne.s32.totalorder 0, %s986
          %s988 = smul.addr %s982, 8
          %s989 = scalar_lea.vmem %s5, %s988
          // Predicated region
          $region45: #{tpu_custom_call.1} parent=43 // pred_check
            %p990 = pneg %p987
          $region46: #{tpu_custom_call.1} parent=43 // pred_check_branch
            %992 = sbr.rel (%p990) target = $region48
          $region47: #{tpu_custom_call.1} parent=43 // pred_region
            // Predicated region
            $region49: #{tpu_custom_call.1} parent=47 // pred_check
              _
            $region50: #{tpu_custom_call.1} parent=47 // pred_check_branch
              %994 = sbr.rel (0) target = $region52
            $region51: #{tpu_custom_call.1} parent=47 // pred_region
              // Predicated region
              $region71: #{tpu_custom_call.1} parent=51 // pred_check
                _
              $region72: #{tpu_custom_call.1} parent=51 // pred_check_branch
                %1071 = sbr.rel (0) target = $region74
              $region73: #{tpu_custom_call.1} parent=51 // pred_region
                %s1072 = sdiv.u32.pop %s985, 14
                %s1073 = srem.u32.pop %s985, 14
                // While loop
                $region75: #{tpu_custom_call.1} parent=73 // loop_pre_header
                  _
                $region76: #{tpu_custom_call.1} parent=73 // loop_header
                  %s1075 = sphi 0, %s1077
                  %p1076 = scmp.ge.s32.totalorder %s1075, %s1072
                  %s1080 = sphi 0, %s1113
                  %s1081 = sphi %s978, %s1116
                  %s1082 = sphi %s989, %s1117
                $region77: #{tpu_custom_call.1} parent=73 // loop_header_branch
                  %1079 = sbr.rel (%p1076) target = $region81
                $region78: #{tpu_custom_call.1} parent=73 // loop_body
                  %v1083 = vld [vmem:[%s1081] sm:$0xff]
                  %1084 = vst [vmem:[%s1082] sm:$0xff] %v1083
                  %v1085 = vld [vmem:[%s1081 + $0x8] sm:$0xff]
                  %1086 = vst [vmem:[%s1082 + $0x8] sm:$0xff] %v1085
                  %v1087 = vld [vmem:[%s1081 + $0x10] sm:$0xff]
                  %1088 = vst [vmem:[%s1082 + $0x10] sm:$0xff] %v1087
                  %v1089 = vld [vmem:[%s1081 + $0x18] sm:$0xff]
                  %1090 = vst [vmem:[%s1082 + $0x18] sm:$0xff] %v1089
                  %v1091 = vld [vmem:[%s1081 + $0x20] sm:$0xff]
                  %1092 = vst [vmem:[%s1082 + $0x20] sm:$0xff] %v1091
                  %v1093 = vld [vmem:[%s1081 + $0x28] sm:$0xff]
                  %1094 = vst [vmem:[%s1082 + $0x28] sm:$0xff] %v1093
                  %v1095 = vld [vmem:[%s1081 + $0x30] sm:$0xff]
                  %1096 = vst [vmem:[%s1082 + $0x30] sm:$0xff] %v1095
                  %v1097 = vld [vmem:[%s1081 + $0x38] sm:$0xff]
                  %1098 = vst [vmem:[%s1082 + $0x38] sm:$0xff] %v1097
                  %v1099 = vld [vmem:[%s1081 + $0x40] sm:$0xff]
                  %1100 = vst [vmem:[%s1082 + $0x40] sm:$0xff] %v1099
                  %v1101 = vld [vmem:[%s1081 + $0x48] sm:$0xff]
                  %1102 = vst [vmem:[%s1082 + $0x48] sm:$0xff] %v1101
                  %v1103 = vld [vmem:[%s1081 + $0x50] sm:$0xff]
                  %1104 = vst [vmem:[%s1082 + $0x50] sm:$0xff] %v1103
                  %v1105 = vld [vmem:[%s1081 + $0x58] sm:$0xff]
                  %1106 = vst [vmem:[%s1082 + $0x58] sm:$0xff] %v1105
                  %v1107 = vld [vmem:[%s1081 + $0x60] sm:$0xff]
                  %1108 = vst [vmem:[%s1082 + $0x60] sm:$0xff] %v1107
                  %v1109 = vld [vmem:[%s1081 + $0x68] sm:$0xff]
                  %1110 = vst [vmem:[%s1082 + $0x68] sm:$0xff] %v1109
                  %s1111 = sadd.s32 1, %s1080
                  %p1112 = scmp.ge.s32.totalorder %s1111, %s1072
                  %s1113 = scalar_select %p1112, 0, %s1111
                  %s1114 = smul.u32 %s1113, 112
                  %s1115 = smul.u32 %s1113, 112
                  %s1116 = scalar_lea.vmem %s978, %s1114 [#allocation2]
                  %s1117 = scalar_lea.vmem %s989, %s1115
                $region79: #{tpu_custom_call.1} parent=73 // loop_footer
                  %s1077 = sadd.s32 %s1075, 1
                $region80: #{tpu_custom_call.1} parent=73 // loop_footer_branch
                  %1074 = sbr.rel target = $region76
                $region81: #{tpu_custom_call.1} parent=73 // loop_exit
                  _
                %s1118 = sdiv.u32.pop %s985, 14
                %s1119 = srem.u32.pop %s985, 14
                %s1120 = smul.u32 %s1118, 14
                %s1121 = smul.u32 8, %s1120
                %s1122 = scalar_lea.vmem %s978, %s1121 [#allocation2]
                %s1123 = smul.u32 8, %s1120
                %s1124 = scalar_lea.vmem %s989, %s1123
                // While loop
                $region82: #{tpu_custom_call.1} parent=73 // loop_pre_header
                  _
                $region83: #{tpu_custom_call.1} parent=73 // loop_header
                  %s1126 = sphi 0, %s1128
                  %p1127 = scmp.ge.s32.totalorder %s1126, %s1119
                  %s1131 = sphi 0, %s1138
                  %s1132 = sphi %s1122, %s1141
                  %s1133 = sphi %s1124, %s1142
                $region84: #{tpu_custom_call.1} parent=73 // loop_header_branch
                  %1130 = sbr.rel (%p1127) target = $region88
                $region85: #{tpu_custom_call.1} parent=73 // loop_body
                  %v1134 = vld [vmem:[%s1132] sm:$0xff]
                  %1135 = vst [vmem:[%s1133] sm:$0xff] %v1134
                  %s1136 = sadd.s32 1, %s1131
                  %p1137 = scmp.ge.s32.totalorder %s1136, %s1119
                  %s1138 = scalar_select %p1137, 0, %s1136
                  %s1139 = smul.u32 %s1138, 8
                  %s1140 = smul.u32 %s1138, 8
                  %s1141 = scalar_lea.vmem %s1122, %s1139 [#allocation2]
                  %s1142 = scalar_lea.vmem %s1124, %s1140
                $region86: #{tpu_custom_call.1} parent=73 // loop_footer
                  %s1128 = sadd.s32 %s1126, 1
                $region87: #{tpu_custom_call.1} parent=73 // loop_footer_branch
                  %1125 = sbr.rel target = $region83
                $region88: #{tpu_custom_call.1} parent=73 // loop_exit
                  _
              $region74: #{tpu_custom_call.1} parent=51 // pred_fallthru
                _
              // Predicated region
              $region89: #{tpu_custom_call.1} parent=51 // pred_check
                _
              $region90: #{tpu_custom_call.1} parent=51 // pred_check_branch
                %1144 = sbr.rel target = $region92
              $region91: #{tpu_custom_call.1} parent=51 // pred_region
                _
              $region92: #{tpu_custom_call.1} parent=51 // pred_fallthru
                _
            $region52: #{tpu_custom_call.1} parent=47 // pred_fallthru
              _
            // Predicated region
            $region53: #{tpu_custom_call.1} parent=47 // pred_check
              _
            $region54: #{tpu_custom_call.1} parent=47 // pred_check_branch
              %996 = sbr.rel target = $region56
            $region55: #{tpu_custom_call.1} parent=47 // pred_region
              %s998 = ssub.s32 256, 1
              %s999 = sdiv.u32.pop %s985, 14
              %s1000 = srem.u32.pop %s985, 14
              // While loop
              $region57: #{tpu_custom_call.1} parent=55 // loop_pre_header
                _
              $region58: #{tpu_custom_call.1} parent=55 // loop_header
                %s1002 = sphi 0, %s1004
                %p1003 = scmp.ge.s32.totalorder %s1002, %s999
                %s1007 = sphi 0, %s1040
                %s1008 = sphi %s978, %s1043
                %s1009 = sphi %s989, %s1044
              $region59: #{tpu_custom_call.1} parent=55 // loop_header_branch
                %1006 = sbr.rel (%p1003) target = $region63
              $region60: #{tpu_custom_call.1} parent=55 // loop_body
                %v1010 = vld [vmem:[%s1008] sm:%s998]
                %1011 = vst [vmem:[%s1009] sm:%s998] %v1010
                %v1012 = vld [vmem:[%s1008 + $0x8] sm:%s998]
                %1013 = vst [vmem:[%s1009 + $0x8] sm:%s998] %v1012
                %v1014 = vld [vmem:[%s1008 + $0x10] sm:%s998]
                %1015 = vst [vmem:[%s1009 + $0x10] sm:%s998] %v1014
                %v1016 = vld [vmem:[%s1008 + $0x18] sm:%s998]
                %1017 = vst [vmem:[%s1009 + $0x18] sm:%s998] %v1016
                %v1018 = vld [vmem:[%s1008 + $0x20] sm:%s998]
                %1019 = vst [vmem:[%s1009 + $0x20] sm:%s998] %v1018
                %v1020 = vld [vmem:[%s1008 + $0x28] sm:%s998]
                %1021 = vst [vmem:[%s1009 + $0x28] sm:%s998] %v1020
                %v1022 = vld [vmem:[%s1008 + $0x30] sm:%s998]
                %1023 = vst [vmem:[%s1009 + $0x30] sm:%s998] %v1022
                %v1024 = vld [vmem:[%s1008 + $0x38] sm:%s998]
                %1025 = vst [vmem:[%s1009 + $0x38] sm:%s998] %v1024
                %v1026 = vld [vmem:[%s1008 + $0x40] sm:%s998]
                %1027 = vst [vmem:[%s1009 + $0x40] sm:%s998] %v1026
                %v1028 = vld [vmem:[%s1008 + $0x48] sm:%s998]
                %1029 = vst [vmem:[%s1009 + $0x48] sm:%s998] %v1028
                %v1030 = vld [vmem:[%s1008 + $0x50] sm:%s998]
                %1031 = vst [vmem:[%s1009 + $0x50] sm:%s998] %v1030
                %v1032 = vld [vmem:[%s1008 + $0x58] sm:%s998]
                %1033 = vst [vmem:[%s1009 + $0x58] sm:%s998] %v1032
                %v1034 = vld [vmem:[%s1008 + $0x60] sm:%s998]
                %1035 = vst [vmem:[%s1009 + $0x60] sm:%s998] %v1034
                %v1036 = vld [vmem:[%s1008 + $0x68] sm:%s998]
                %1037 = vst [vmem:[%s1009 + $0x68] sm:%s998] %v1036
                %s1038 = sadd.s32 1, %s1007
                %p1039 = scmp.ge.s32.totalorder %s1038, %s999
                %s1040 = scalar_select %p1039, 0, %s1038
                %s1041 = smul.u32 %s1040, 112
                %s1042 = smul.u32 %s1040, 112
                %s1043 = scalar_lea.vmem %s978, %s1041 [#allocation2]
                %s1044 = scalar_lea.vmem %s989, %s1042
              $region61: #{tpu_custom_call.1} parent=55 // loop_footer
                %s1004 = sadd.s32 %s1002, 1
              $region62: #{tpu_custom_call.1} parent=55 // loop_footer_branch
                %1001 = sbr.rel target = $region58
              $region63: #{tpu_custom_call.1} parent=55 // loop_exit
                _
              %s1045 = sdiv.u32.pop %s985, 14
              %s1046 = srem.u32.pop %s985, 14
              %s1047 = smul.u32 %s1045, 14
              %s1048 = smul.u32 8, %s1047
              %s1049 = scalar_lea.vmem %s978, %s1048 [#allocation2]
              %s1050 = smul.u32 8, %s1047
              %s1051 = scalar_lea.vmem %s989, %s1050
              // While loop
              $region64: #{tpu_custom_call.1} parent=55 // loop_pre_header
                _
              $region65: #{tpu_custom_call.1} parent=55 // loop_header
                %s1053 = sphi 0, %s1055
                %p1054 = scmp.ge.s32.totalorder %s1053, %s1046
                %s1058 = sphi 0, %s1065
                %s1059 = sphi %s1049, %s1068
                %s1060 = sphi %s1051, %s1069
              $region66: #{tpu_custom_call.1} parent=55 // loop_header_branch
                %1057 = sbr.rel (%p1054) target = $region70
              $region67: #{tpu_custom_call.1} parent=55 // loop_body
                %v1061 = vld [vmem:[%s1059] sm:%s998]
                %1062 = vst [vmem:[%s1060] sm:%s998] %v1061
                %s1063 = sadd.s32 1, %s1058
                %p1064 = scmp.ge.s32.totalorder %s1063, %s1046
                %s1065 = scalar_select %p1064, 0, %s1063
                %s1066 = smul.u32 %s1065, 8
                %s1067 = smul.u32 %s1065, 8
                %s1068 = scalar_lea.vmem %s1049, %s1066 [#allocation2]
                %s1069 = scalar_lea.vmem %s1051, %s1067
              $region68: #{tpu_custom_call.1} parent=55 // loop_footer
                %s1055 = sadd.s32 %s1053, 1
              $region69: #{tpu_custom_call.1} parent=55 // loop_footer_branch
                %1052 = sbr.rel target = $region65
              $region70: #{tpu_custom_call.1} parent=55 // loop_exit
                _
            $region56: #{tpu_custom_call.1} parent=47 // pred_fallthru
              _
          $region48: #{tpu_custom_call.1} parent=43 // pred_fallthru
            _
          %1145 = vnop
        $region44: #{tpu_custom_call.1} parent=39 // pred_fallthru
          _
      $region40: #{tpu_custom_call.1} parent=5 // pred_fallthru
        _
      %p1146 = scmp.le.s32.totalorder 2, %s11
      // Predicated region
      $region93: #{tpu_custom_call.1} parent=5 // pred_check
        %p1147 = pneg %p1146
      $region94: #{tpu_custom_call.1} parent=5 // pred_check_branch
        %1149 = sbr.rel (%p1147) target = $region96
      $region95: #{tpu_custom_call.1} parent=5 // pred_region
        %s1150 = ssub.s32 %s11, 2
        // Predicated region
        $region97: #{tpu_custom_call.1} parent=95 // pred_check
          %p1151 = pneg %p150
        $region98: #{tpu_custom_call.1} parent=95 // pred_check_branch
          %1153 = sbr.rel (%p1151) target = $region100
        $region99: #{tpu_custom_call.1} parent=95 // pred_region
          %s1154 = sand.u32 %s135, 1
          %s1155 = sand.u32 %s135, 1
          %s1156 = smul.addr %s1155, 112
          %s1157 = scalar_lea.vmem [#allocation2], %s1156
        $region100: #{tpu_custom_call.1} parent=95 // pred_fallthru
          _
      $region96: #{tpu_custom_call.1} parent=5 // pred_fallthru
        _
    $region6: #{tpu_custom_call.1} parent=1 // loop_footer
      %s15 = sadd.s32 1, %s11
    $region7: #{tpu_custom_call.1} parent=1 // loop_footer_branch
      %10 = sbr.rel target = $region3
    $region8: #{tpu_custom_call.1} parent=1 // loop_exit
      _

</llo_original>
